<compile_context>
chip_gen: v5e
topology: v5e:2x2
jax: 0.10.0
libtpu: 0.0.40
codegen_flags: <defaults>
</compile_context>

<pallas_src>
import functools

import jax
import jax.numpy as jnp
from jax.experimental import pallas as pl
from jax.experimental.pallas import tpu as pltpu


def _moon_mlp_kernel(x_ref, w1_ref, b1_ref, w2_ref, b2_ref, w3_ref, b3_ref,
                     o_ref, *, act_dtype, mxu_dtype, precision):
    x = x_ref[...]                      # [2, tm]   (batch on lanes), f32
    w1 = w1_ref[...]                    # [n1, 2]   f32

    # ---- Layer 1: in_features = 2 -> two VPU broadcast FMAs (skip the MXU).
    h1_pre = w1[:, 0:1] * x[0:1, :] + w1[:, 1:2] * x[1:2, :] + b1_ref[...]
    h1 = jnp.tanh(h1_pre.astype(act_dtype))            # [n1, tm]  (EUP)

    # ---- Layer 2: the only real matmul -> MXU.  [n2, n1] @ [n1, tm].
    h2_pre = jnp.dot(w2_ref[...].astype(mxu_dtype), h1.astype(mxu_dtype),
                     preferred_element_type=jnp.float32,
                     precision=precision) + b2_ref[...]
    h2 = jnp.tanh(h2_pre.astype(act_dtype))            # [n2, tm]  (EUP)

    # ---- Layer 3: out_features = 1 -> mul + sublane (XLU) reduce, f32 accum.
    out = (jnp.sum(w3_ref[...] * h2.astype(jnp.float32), axis=0, keepdims=True)
           + b3_ref[...])                              # [1, tm]
    o_ref[...] = out.astype(o_ref.dtype)


def _pick_tm(B):
    """Largest lane-aligned batch tile that still gives grid >= 4 (>= 2 for
    small batches): amortises per-step pipeline overhead, keeps the x/out
    DMAs double-buffered, and lets the batch axis split across TensorCores."""
    for cand in (8192, 4096, 2048, 1024, 512, 256):
        if B >= 4 * cand:
            return cand
    return 128


def _auto_dtypes():
    kind = jax.devices()[0].device_kind.lower()
    if any(tag in kind for tag in ("v6", "v7", "7x")):
        # v6e / v7x: bf16 EUP tanh + bf16 MXU operands (f32 accumulation).
        return jnp.bfloat16, jnp.bfloat16
    # v5e and older: no bf16 EUP/VPU -> f32 tanh, bf16 MXU operands only.
    return jnp.float32, jnp.bfloat16


def moon_model_forward(x, params, *, tm=None, act_dtype=None, mxu_dtype=None,
                       x_is_transposed=False):
    """Fused forward pass of MoonModel.

    x:      [B, 2] float32 (or [2, B] if x_is_transposed=True)
    params: PyTorch-layout params:
              w1 [n1, 2], b1 [n1], w2 [n2, n1], b2 [n2], w3 [1, n2], b3 [1]
    returns [B, 1] float32
    """
    w1, b1 = params["w1"], params["b1"]
    w2, b2 = params["w2"], params["b2"]
    w3, b3 = params["w3"], params["b3"]
    n1, n2 = w1.shape[0], w2.shape[0]

    if act_dtype is None or mxu_dtype is None:
        auto_act, auto_mxu = _auto_dtypes()
        act_dtype = auto_act if act_dtype is None else act_dtype
        mxu_dtype = auto_mxu if mxu_dtype is None else mxu_dtype
    precision = (jax.lax.Precision.HIGHEST
                 if jnp.dtype(mxu_dtype) == jnp.dtype(jnp.float32)
                 else jax.lax.Precision.DEFAULT)

    # Batch-on-lanes layout: x^T [2, B].  Prefer x_is_transposed=True upstream
    # so no HBM transpose is needed at all.
    x_t = x if x_is_transposed else x.T                 # [2, B]
    B = x_t.shape[1]

    if tm is None:
        tm = _pick_tm(B)
    assert tm % 128 == 0, "tm must be a lane-aligned multiple of 128"

    # Zero-pad the batch up to a multiple of the tile (sliced off at the end).
    B_pad = pl.cdiv(B, tm) * tm
    if B_pad != B:
        x_t = jnp.pad(x_t, ((0, 0), (0, B_pad - B)))
    grid = (B_pad // tm,)

    b1c = b1.reshape(n1, 1)
    b2c = b2.reshape(n2, 1)
    w3c = w3.reshape(n2, 1)
    b3c = b3.reshape(1, 1)

    def rep(shape):
        # Small weights / biases: same (0, ..) block every step -> Pallas keeps
        # them resident in VMEM (no re-DMA between grid steps).
        return pl.BlockSpec(shape, lambda i: tuple(0 for _ in shape))

    cost = pl.CostEstimate(
        flops=2 * B_pad * (2 * n1 + n1 * n2 + n2),
        transcendentals=B_pad * (n1 + n2),
        bytes_accessed=(2 * B_pad + B_pad) * 4
        + (w1.size + b1.size + w2.size + b2.size + w3.size + b3.size) * 4,
    )

    kernel = functools.partial(_moon_mlp_kernel, act_dtype=act_dtype,
                               mxu_dtype=mxu_dtype, precision=precision)

    out_t = pl.pallas_call(
        kernel,
        out_shape=jax.ShapeDtypeStruct((1, B_pad), jnp.float32),
        grid_spec=pltpu.PrefetchScalarGridSpec(
            num_scalar_prefetch=0,
            grid=grid,
            in_specs=[
                pl.BlockSpec((2, tm), lambda i: (0, i)),   # x^T tile (lane-dense)
                rep((n1, 2)),
                rep((n1, 1)),
                rep((n2, n1)),
                rep((n2, 1)),
                rep((n2, 1)),
                rep((1, 1)),
            ],
            out_specs=pl.BlockSpec((1, tm), lambda i: (0, i)),  # lane-dense out
        ),
        compiler_params=pltpu.CompilerParams(
            # Independent batch axis -> double-buffered DMAs, megacore-shardable.
            dimension_semantics=("parallel",),
            # Let XLA fuse the (optional) [B,2]->[2,B] transpose / zero-pad of x
            # into the kernel input instead of materialising it in HBM first.
            allow_input_fusion=[True] + [False] * 6,
        ),
        cost_estimate=cost,
    )(x_t, w1, b1c, w2, b2c, w3c, b3c)

    return out_t[:, :B].T                               # [B, 1] (free relayout)


def init_params(key, n1, n2):
    """Deterministic init mimicking nn.Linear's U(-1/sqrt(fan_in), 1/sqrt(fan_in)).
    Weights are in PyTorch layout: [out_features, in_features]."""
    ks = jax.random.split(key, 6)

    def lin(kw, kb, fan_in, fan_out):
        bound = 1.0 / jnp.sqrt(float(fan_in))
        w = jax.random.uniform(kw, (fan_out, fan_in), jnp.float32, -bound, bound)
        b = jax.random.uniform(kb, (fan_out,), jnp.float32, -bound, bound)
        return w, b

    w1, b1 = lin(ks[0], ks[1], 2, n1)
    w2, b2 = lin(ks[2], ks[3], n1, n2)
    w3, b3 = lin(ks[4], ks[5], n2, 1)
    return {"w1": w1, "b1": b1, "w2": w2, "b2": b2, "w3": w3, "b3": b3}


def reference_forward(x, p):
    h1 = jnp.tanh(x @ p["w1"].T + p["b1"])
    h2 = jnp.tanh(h1 @ p["w2"].T + p["b2"])
    return h2 @ p["w3"].T + p["b3"]


if __name__ == "__main__":
    key = jax.random.PRNGKey(0)
    k_x, k_p, k_x2 = jax.random.split(key, 3)

    n1, n2 = 32, 32
    params = init_params(k_p, n1, n2)

    # 1) Tiny ragged batch (zero-padded to one 128-lane tile), exact-f32 path.
    B = 8
    x = jax.random.normal(k_x, (B, 2), dtype=jnp.float32)
    out = jax.block_until_ready(
        moon_model_forward(x, params,
                           act_dtype=jnp.float32, mxu_dtype=jnp.float32))
    ref = reference_forward(x, params)
    assert out.shape == (B, 1)
    assert jnp.allclose(out, ref, atol=1e-5, rtol=1e-5)

    # 2) Ragged batch > 256 (padded to 3 x 128-lane tiles, grid = 3 -> pipelined
    #    DMAs, megacore-shardable) with auto dtypes (bf16 tanh/MXU on v6e/v7x,
    #    f32 tanh + bf16 MXU operands on v5e and older).
    B2 = 300
    x2 = jax.random.normal(k_x2, (B2, 2), dtype=jnp.float32)
    out2 = jax.block_until_ready(moon_model_forward(x2, params))
    ref2 = reference_forward(x2, params)
    assert out2.shape == (B2, 1)
    assert jnp.allclose(out2, ref2, atol=3e-2, rtol=3e-2)

    # 3) Same batch fed pre-transposed ([2, B]) -> no wrapper HBM transpose.
    out3 = jax.block_until_ready(
        moon_model_forward(x2.T, params, x_is_transposed=True))
    assert out3.shape == (B2, 1)
    assert jnp.allclose(out3, ref2, atol=3e-2, rtol=3e-2)

    print("KERNEL_OK")
</pallas_src>

<mosaic_0001>
module attributes {stable_mosaic.version = 11 : i64} {
  func.func @_moon_mlp_kernel(%arg0: i32, %arg1: memref<2x128xf32, #tpu.memory_space<vmem>>, %arg2: memref<32x2xf32, #tpu.memory_space<vmem>>, %arg3: memref<32x1xf32, #tpu.memory_space<vmem>>, %arg4: memref<32x32xf32, #tpu.memory_space<vmem>>, %arg5: memref<32x1xf32, #tpu.memory_space<vmem>>, %arg6: memref<32x1xf32, #tpu.memory_space<vmem>>, %arg7: memref<1x1xf32, #tpu.memory_space<vmem>>, %arg8: memref<1x128xf32, #tpu.memory_space<vmem>>) attributes {dimension_semantics = [#tpu.dimension_semantics<parallel>], iteration_bounds = array<i64: 1>, scalar_prefetch = 0 : i64, scratch_operands = 0 : i64, tpu.core_type = #tpu.core_type<tc>, window_params = [{transform_indices = @transform_0, window_bounds = array<i64: 2, 128>}, {pipeline_mode = #tpu.pipeline_mode<synchronous>, transform_indices = @transform_1, window_bounds = array<i64: 32, 2>}, {pipeline_mode = #tpu.pipeline_mode<synchronous>, transform_indices = @transform_2, window_bounds = array<i64: 32, 1>}, {pipeline_mode = #tpu.pipeline_mode<synchronous>, transform_indices = @transform_3, window_bounds = array<i64: 32, 32>}, {pipeline_mode = #tpu.pipeline_mode<synchronous>, transform_indices = @transform_4, window_bounds = array<i64: 32, 1>}, {pipeline_mode = #tpu.pipeline_mode<synchronous>, transform_indices = @transform_5, window_bounds = array<i64: 32, 1>}, {pipeline_mode = #tpu.pipeline_mode<synchronous>, transform_indices = @transform_6, window_bounds = array<i64: 1, 1>}, {transform_indices = @transform_7, window_bounds = array<i64: 1, 128>}]} {
    %c0 = arith.constant 0 : index
    %c0_0 = arith.constant 0 : index
    %0 = vector.load %arg1[%c0, %c0_0] : memref<2x128xf32, #tpu.memory_space<vmem>>, vector<2x128xf32>
    %c0_1 = arith.constant 0 : index
    %c0_2 = arith.constant 0 : index
    %1 = vector.load %arg2[%c0_1, %c0_2] : memref<32x2xf32, #tpu.memory_space<vmem>>, vector<32x2xf32>
    %2 = vector.extract_strided_slice %1 {offsets = [0, 0], sizes = [32, 1], strides = [1, 1]} : vector<32x2xf32> to vector<32x1xf32>
    %3 = vector.extract_strided_slice %0 {offsets = [0, 0], sizes = [1, 128], strides = [1, 1]} : vector<2x128xf32> to vector<1x128xf32>
    %4 = vector.broadcast %2 : vector<32x1xf32> to vector<32x128xf32>
    %5 = vector.broadcast %3 : vector<1x128xf32> to vector<32x128xf32>
    %6 = arith.mulf %4, %5 : vector<32x128xf32>
    %7 = vector.extract_strided_slice %1 {offsets = [0, 1], sizes = [32, 1], strides = [1, 1]} : vector<32x2xf32> to vector<32x1xf32>
    %8 = vector.extract_strided_slice %0 {offsets = [1, 0], sizes = [1, 128], strides = [1, 1]} : vector<2x128xf32> to vector<1x128xf32>
    %9 = vector.broadcast %7 : vector<32x1xf32> to vector<32x128xf32>
    %10 = vector.broadcast %8 : vector<1x128xf32> to vector<32x128xf32>
    %11 = arith.mulf %9, %10 : vector<32x128xf32>
    %12 = arith.addf %6, %11 : vector<32x128xf32>
    %c0_3 = arith.constant 0 : index
    %c0_4 = arith.constant 0 : index
    %13 = vector.load %arg3[%c0_3, %c0_4] : memref<32x1xf32, #tpu.memory_space<vmem>>, vector<32x1xf32>
    %14 = vector.broadcast %13 : vector<32x1xf32> to vector<32x128xf32>
    %15 = arith.addf %12, %14 : vector<32x128xf32>
    %16 = math.tanh %15 : vector<32x128xf32>
    %c0_5 = arith.constant 0 : index
    %c0_6 = arith.constant 0 : index
    %17 = vector.load %arg4[%c0_5, %c0_6] : memref<32x32xf32, #tpu.memory_space<vmem>>, vector<32x32xf32>
    %cst = arith.constant dense<0.000000e+00> : vector<32x128xf32>
    %18 = tpu.matmul %17, %16, %cst {dimension_numbers = #tpu.dot_dimension_numbers<[1], [0], [0], [1], [0, 0, 1, 1], [], []>, precision = #tpu.contract_precision<fp32>} : vector<32x32xf32>, vector<32x128xf32>, vector<32x128xf32> -> vector<32x128xf32>
    %c0_7 = arith.constant 0 : index
    %c0_8 = arith.constant 0 : index
    %19 = vector.load %arg5[%c0_7, %c0_8] : memref<32x1xf32, #tpu.memory_space<vmem>>, vector<32x1xf32>
    %20 = vector.broadcast %19 : vector<32x1xf32> to vector<32x128xf32>
    %21 = arith.addf %18, %20 : vector<32x128xf32>
    %22 = math.tanh %21 : vector<32x128xf32>
    %c0_9 = arith.constant 0 : index
    %c0_10 = arith.constant 0 : index
    %23 = vector.load %arg6[%c0_9, %c0_10] : memref<32x1xf32, #tpu.memory_space<vmem>>, vector<32x1xf32>
    %24 = vector.broadcast %23 : vector<32x1xf32> to vector<32x128xf32>
    %25 = arith.mulf %24, %22 : vector<32x128xf32>
    %cst_11 = arith.constant dense<0.000000e+00> : vector<128xf32>
    %26 = vector.multi_reduction <add>, %25, %cst_11 [0] : vector<32x128xf32> to vector<128xf32>
    %27 = vector.shape_cast %26 : vector<128xf32> to vector<1x128xf32>
    %c0_12 = arith.constant 0 : index
    %c0_13 = arith.constant 0 : index
    %28 = vector.load %arg7[%c0_12, %c0_13] : memref<1x1xf32, #tpu.memory_space<vmem>>, vector<1x1xf32>
    %29 = vector.broadcast %28 : vector<1x1xf32> to vector<1x128xf32>
    %30 = arith.addf %27, %29 : vector<1x128xf32>
    %c0_14 = arith.constant 0 : index
    %c0_15 = arith.constant 0 : index
    %31 = vector.load %arg8[%c0_14, %c0_15] : memref<1x128xf32, #tpu.memory_space<vmem>>, vector<1x128xf32>
    tpu.vector_store %arg8[%c0_14, %c0_15], %30 {strides = array<i32>} : memref<1x128xf32, #tpu.memory_space<vmem>>, vector<1x128xf32>,
    return
  }
  func.func @transform_0(%arg0: i32) -> (i32, i32) {
    %c0_i32 = arith.constant 0 : i32
    %c0_i32_0 = arith.constant 0 : i32
    return %c0_i32, %arg0 : i32, i32
  }
  func.func @transform_1(%arg0: i32) -> (i32, i32) {
    %c0_i32 = arith.constant 0 : i32
    %c0_i32_0 = arith.constant 0 : i32
    %c0_i32_1 = arith.constant 0 : i32
    return %c0_i32, %c0_i32_0 : i32, i32
  }
  func.func @transform_2(%arg0: i32) -> (i32, i32) {
    %c0_i32 = arith.constant 0 : i32
    %c0_i32_0 = arith.constant 0 : i32
    %c0_i32_1 = arith.constant 0 : i32
    return %c0_i32, %c0_i32_0 : i32, i32
  }
  func.func @transform_3(%arg0: i32) -> (i32, i32) {
    %c0_i32 = arith.constant 0 : i32
    %c0_i32_0 = arith.constant 0 : i32
    %c0_i32_1 = arith.constant 0 : i32
    return %c0_i32, %c0_i32_0 : i32, i32
  }
  func.func @transform_4(%arg0: i32) -> (i32, i32) {
    %c0_i32 = arith.constant 0 : i32
    %c0_i32_0 = arith.constant 0 : i32
    %c0_i32_1 = arith.constant 0 : i32
    return %c0_i32, %c0_i32_0 : i32, i32
  }
  func.func @transform_5(%arg0: i32) -> (i32, i32) {
    %c0_i32 = arith.constant 0 : i32
    %c0_i32_0 = arith.constant 0 : i32
    %c0_i32_1 = arith.constant 0 : i32
    return %c0_i32, %c0_i32_0 : i32, i32
  }
  func.func @transform_6(%arg0: i32) -> (i32, i32) {
    %c0_i32 = arith.constant 0 : i32
    %c0_i32_0 = arith.constant 0 : i32
    %c0_i32_1 = arith.constant 0 : i32
    return %c0_i32, %c0_i32_0 : i32, i32
  }
  func.func @transform_7(%arg0: i32) -> (i32, i32) {
    %c0_i32 = arith.constant 0 : i32
    %c0_i32_0 = arith.constant 0 : i32
    return %c0_i32, %arg0 : i32, i32
  }
}

</mosaic_0001>

<llo_original>
// kernel: tpu_custom_call.1
$region0: #{tpu_custom_call.1}
  #allocation0 [shape = 'u32[]', space=smem, size = 0x4, offset = 0x4, fixed_abs, tag = 'smem constant byte address 0x4 - core index']
  #allocation1 [shape = 'u32[72,128]{1,0:T(1,128)}', space=vmem, size = 0x9000, scoped, tag = 'internal scratch']
  #allocation2 [shape = 'f32[1,1]{1,0:T(1,128)S(1)}', space=vmem, size = 0x200, scoped, tag = 'scoped memory for tpu_custom_call.1']
  %s0 = inlined_call_operand.vmem [shape: f32[2,128], index: 0, kind: input, shape index: {}]
  %s1 = inlined_call_operand.vmem [shape: f32[32,2], index: 1, kind: input, shape index: {}]
  %s2 = inlined_call_operand.vmem [shape: f32[32,1], index: 2, kind: input, shape index: {}]
  %s3 = inlined_call_operand.vmem [shape: f32[32,32], index: 3, kind: input, shape index: {}]
  %s4 = inlined_call_operand.vmem [shape: f32[32,1], index: 4, kind: input, shape index: {}]
  %s5 = inlined_call_operand.vmem [shape: f32[32,1], index: 5, kind: input, shape index: {}]
  %s6 = inlined_call_operand.<no memory space> [shape: f32[1,1], index: 6, kind: input, shape index: {}]
  %s7 = inlined_call_operand.hbm [shape: f32[1,128], index: 7, kind: output, shape index: {}]
  %s8 = sld [smem:[#allocation0]]
  $region38: #{tpu_custom_call.1} parent=0
    _
  %s10 = ssub.s32 1, %s8
  %s11 = scalar_select 0, %s10, %s8
  %v12 = vstv %s6
  %13 = vst [vmem:[#allocation2] sm:$0x1] %v12
  $region1: #{tpu_custom_call.1} parent=0
    #allocation3 [shape = 'u8[512]{0}', space=vmem, size = 0x400, scoped, tag = 'output window, operand 0, single buffered']
    #allocation4 [shape = 's32[1]{0}', space=sflag, size = 0x4, scoped, tag = 'scoped memory for tpu_custom_call.1']
    %14 = vsyncpa [#allocation4], 0
    // Predicated region
    $region2: #{tpu_custom_call.1} parent=1 // pred_check
      _
    $region3: #{tpu_custom_call.1} parent=1 // pred_check_branch
      %16 = sbr.rel (0) target = $region5
    $region4: #{tpu_custom_call.1} parent=1 // pred_region
      _
    $region5: #{tpu_custom_call.1} parent=1 // pred_fallthru
      _
    // Predicated region
    $region6: #{tpu_custom_call.1} parent=1 // pred_check
      _
    $region7: #{tpu_custom_call.1} parent=1 // pred_check_branch
      %18 = sbr.rel (0) target = $region9
    $region8: #{tpu_custom_call.1} parent=1 // pred_region
      _
    $region9: #{tpu_custom_call.1} parent=1 // pred_fallthru
      _
    // Predicated region
    $region10: #{tpu_custom_call.1} parent=1 // pred_check
      _
    $region11: #{tpu_custom_call.1} parent=1 // pred_check_branch
      %20 = sbr.rel (0) target = $region13
    $region12: #{tpu_custom_call.1} parent=1 // pred_region
      _
    $region13: #{tpu_custom_call.1} parent=1 // pred_fallthru
      _
    // Predicated region
    $region14: #{tpu_custom_call.1} parent=1 // pred_check
      _
    $region15: #{tpu_custom_call.1} parent=1 // pred_check_branch
      %22 = sbr.rel (0) target = $region17
    $region16: #{tpu_custom_call.1} parent=1 // pred_region
      _
    $region17: #{tpu_custom_call.1} parent=1 // pred_fallthru
      _
    // Predicated region
    $region18: #{tpu_custom_call.1} parent=1 // pred_check
      _
    $region19: #{tpu_custom_call.1} parent=1 // pred_check_branch
      %24 = sbr.rel (0) target = $region21
    $region20: #{tpu_custom_call.1} parent=1 // pred_region
      _
    $region21: #{tpu_custom_call.1} parent=1 // pred_fallthru
      _
    // Predicated region
    $region22: #{tpu_custom_call.1} parent=1 // pred_check
      _
    $region23: #{tpu_custom_call.1} parent=1 // pred_check_branch
      %26 = sbr.rel (0) target = $region25
    $region24: #{tpu_custom_call.1} parent=1 // pred_region
      _
    $region25: #{tpu_custom_call.1} parent=1 // pred_fallthru
      _
    // Predicated region
    $region26: #{tpu_custom_call.1} parent=1 // pred_check
      _
    $region27: #{tpu_custom_call.1} parent=1 // pred_check_branch
      %28 = sbr.rel (0) target = $region29
    $region28: #{tpu_custom_call.1} parent=1 // pred_region
      _
    $region29: #{tpu_custom_call.1} parent=1 // pred_fallthru
      _
    %v29 = vld [vmem:[%s0] sm:$0x3]
    %v30 = vld [vmem:[%s1] sm:$0xff]
    %v31 = vld [vmem:[%s1 + $0x8] sm:$0xff]
    %v32 = vld [vmem:[%s1 + $0x10] sm:$0xff]
    %v33 = vld [vmem:[%s1 + $0x18] sm:$0xff]
    %35 = vset.pattern.permute.xlu0 0
    %36 = vperm.xlu0 %35, %v30
    %v37 = vpop.permute.xlu0 %36
    %40 = vset.pattern.permute.xlu0 0
    %41 = vperm.xlu0 %40, %v31
    %v42 = vpop.permute.xlu0 %41
    %45 = vset.pattern.permute.xlu0 0
    %46 = vperm.xlu0 %45, %v32
    %v47 = vpop.permute.xlu0 %46
    %50 = vset.pattern.permute.xlu0 0
    %51 = vperm.xlu0 %50, %v33
    %v52 = vpop.permute.xlu0 %51
    %v54 = vperm.slane %v29, 0
    %v55 = vmul.f32 %v37, %v54
    %v56 = vmul.f32 %v42, %v54
    %v57 = vmul.f32 %v47, %v54
    %v58 = vmul.f32 %v52, %v54
    %59 = vset.pattern.permute.xlu0 1
    %60 = vperm.xlu0 %59, %v30
    %v61 = vpop.permute.xlu0 %60
    %63 = vset.pattern.permute.xlu0 1
    %64 = vperm.xlu0 %63, %v31
    %v65 = vpop.permute.xlu0 %64
    %67 = vset.pattern.permute.xlu0 1
    %68 = vperm.xlu0 %67, %v32
    %v69 = vpop.permute.xlu0 %68
    %71 = vset.pattern.permute.xlu0 1
    %72 = vperm.xlu0 %71, %v33
    %v73 = vpop.permute.xlu0 %72
    %v75 = vperm.slane %v29, 1
    %v76 = vmul.f32 %v61, %v75
    %v77 = vmul.f32 %v65, %v75
    %v78 = vmul.f32 %v69, %v75
    %v79 = vmul.f32 %v73, %v75
    %v80 = vadd.f32 %v55, %v76
    %v81 = vadd.f32 %v56, %v77
    %v82 = vadd.f32 %v57, %v78
    %v83 = vadd.f32 %v58, %v79
    %v84 = vld [vmem:[%s2] sm:$0xff]
    %v85 = vld [vmem:[%s2 + $0x8] sm:$0xff]
    %v86 = vld [vmem:[%s2 + $0x10] sm:$0xff]
    %v87 = vld [vmem:[%s2 + $0x18] sm:$0xff]
    %89 = vset.pattern.permute.xlu0 0
    %90 = vperm.xlu0 %89, %v84
    %v91 = vpop.permute.xlu0 %90
    %94 = vset.pattern.permute.xlu0 0
    %95 = vperm.xlu0 %94, %v85
    %v96 = vpop.permute.xlu0 %95
    %99 = vset.pattern.permute.xlu0 0
    %100 = vperm.xlu0 %99, %v86
    %v101 = vpop.permute.xlu0 %100
    %104 = vset.pattern.permute.xlu0 0
    %105 = vperm.xlu0 %104, %v87
    %v106 = vpop.permute.xlu0 %105
    %v108 = vadd.f32 %v80, %v91
    %v109 = vadd.f32 %v81, %v96
    %v110 = vadd.f32 %v82, %v101
    %v111 = vadd.f32 %v83, %v106
    %v112 = vtanh.pop %v108
    %v113 = vtanh.pop %v109
    %v114 = vtanh.pop %v110
    %v115 = vtanh.pop %v111
    %v116 = vld [vmem:[%s3] sm:$0xff]
    %v117 = vld [vmem:[%s3 + $0x8] sm:$0xff]
    %v118 = vld [vmem:[%s3 + $0x10] sm:$0xff]
    %v119 = vld [vmem:[%s3 + $0x18] sm:$0xff]
    %v120 = vld [vmem:[%s4] sm:$0xff]
    %v121 = vld [vmem:[%s4 + $0x8] sm:$0xff]
    %v122 = vld [vmem:[%s4 + $0x10] sm:$0xff]
    %v123 = vld [vmem:[%s4 + $0x18] sm:$0xff]
    %125 = vset.pattern.permute.xlu0 0
    %126 = vperm.xlu0 %125, %v120
    %v127 = vpop.permute.xlu0 %126
    %130 = vset.pattern.permute.xlu0 0
    %131 = vperm.xlu0 %130, %v121
    %v132 = vpop.permute.xlu0 %131
    %135 = vset.pattern.permute.xlu0 0
    %136 = vperm.xlu0 %135, %v122
    %v137 = vpop.permute.xlu0 %136
    %140 = vset.pattern.permute.xlu0 0
    %141 = vperm.xlu0 %140, %v123
    %v142 = vpop.permute.xlu0 %141
    %vm144 = vcmask 261120
    %v146 = vsel %vm144, %v116, 0
    %v149 = vsel %vm144, %v117, 0
    %v152 = vsel %vm144, %v118, 0
    %v155 = vsel %vm144, %v119, 0
    %157 = vmatpush.msra.mxu0 0.0
    %158 = vmatpush.msra.mxu0 0.0
    %159 = vmatpush.msra.mxu0 0.0
    %160 = vmatpush.msra.mxu0 0.0
    %161 = vmatpush.msra.mxu0 0.0
    %162 = vmatpush.msra.mxu0 0.0
    %163 = vmatpush.msra.mxu0 0.0
    %164 = vmatpush.msra.mxu0 0.0
    %165 = vmatpush.msra.mxu0 0.0
    %166 = vmatpush.msra.mxu0 0.0
    %167 = vmatpush.msra.mxu0 0.0
    %168 = vmatpush.msra.mxu0 0.0
    %v169 = vand.u32 %v115, 4294901760
    %170 = vmatpush.msra.mxu0 %v169
    %v171 = vand.u32 %v114, 4294901760
    %172 = vmatpush.msra.mxu0 %v171
    %v173 = vand.u32 %v113, 4294901760
    %174 = vmatpush.msra.mxu0 %v173
    %v175 = vand.u32 %v112, 4294901760
    %176 = vmatpush.msra.mxu0 %v175
    %v177 = vand.u32 %v146, 4294901760
    %v178 = vsub.f32 %v146, %v177
    %v179 = vand.u32 %v178, 4294901760
    %v180 = vsub.f32 %v178, %v179
    %v181 = vand.u32 %v180, 4294901760
    %182 = vmatmul.f32.gmra.mxu0 %v181
    %v183 = vpop.f32.mrf.mxu0
    %v184 = vadd.f32 %v127, %v183
    %v185 = vand.u32 %v149, 4294901760
    %v186 = vsub.f32 %v149, %v185
    %v187 = vand.u32 %v186, 4294901760
    %v188 = vsub.f32 %v186, %v187
    %v189 = vand.u32 %v188, 4294901760
    %190 = vmatmul.f32.gmra.mxu0 %v189
    %v191 = vpop.f32.mrf.mxu0
    %v192 = vadd.f32 %v132, %v191
    %v193 = vand.u32 %v152, 4294901760
    %v194 = vsub.f32 %v152, %v193
    %v195 = vand.u32 %v194, 4294901760
    %v196 = vsub.f32 %v194, %v195
    %v197 = vand.u32 %v196, 4294901760
    %198 = vmatmul.f32.gmra.mxu0 %v197
    %v199 = vpop.f32.mrf.mxu0
    %v200 = vadd.f32 %v137, %v199
    %v201 = vand.u32 %v155, 4294901760
    %v202 = vsub.f32 %v155, %v201
    %v203 = vand.u32 %v202, 4294901760
    %v204 = vsub.f32 %v202, %v203
    %v205 = vand.u32 %v204, 4294901760
    %206 = vmatmul.f32.gmra.mxu0 %v205
    %v207 = vpop.f32.mrf.mxu0
    %v208 = vadd.f32 %v142, %v207
    %209 = vdwg.mxu0
    %210 = vmatpush.msra.mxu0 0.0
    %211 = vmatpush.msra.mxu0 0.0
    %212 = vmatpush.msra.mxu0 0.0
    %213 = vmatpush.msra.mxu0 0.0
    %214 = vmatpush.msra.mxu0 0.0
    %215 = vmatpush.msra.mxu0 0.0
    %216 = vmatpush.msra.mxu0 0.0
    %217 = vmatpush.msra.mxu0 0.0
    %218 = vmatpush.msra.mxu0 0.0
    %219 = vmatpush.msra.mxu0 0.0
    %220 = vmatpush.msra.mxu0 0.0
    %221 = vmatpush.msra.mxu0 0.0
    %v222 = vand.u32 %v115, 4294901760
    %v223 = vsub.f32 %v115, %v222
    %v224 = vand.u32 %v223, 4294901760
    %v225 = vsub.f32 %v223, %v224
    %v226 = vand.u32 %v225, 4294901760
    %227 = vmatpush.msra.mxu0 %v226
    %v228 = vand.u32 %v114, 4294901760
    %v229 = vsub.f32 %v114, %v228
    %v230 = vand.u32 %v229, 4294901760
    %v231 = vsub.f32 %v229, %v230
    %v232 = vand.u32 %v231, 4294901760
    %233 = vmatpush.msra.mxu0 %v232
    %v234 = vand.u32 %v113, 4294901760
    %v235 = vsub.f32 %v113, %v234
    %v236 = vand.u32 %v235, 4294901760
    %v237 = vsub.f32 %v235, %v236
    %v238 = vand.u32 %v237, 4294901760
    %239 = vmatpush.msra.mxu0 %v238
    %v240 = vand.u32 %v112, 4294901760
    %v241 = vsub.f32 %v112, %v240
    %v242 = vand.u32 %v241, 4294901760
    %v243 = vsub.f32 %v241, %v242
    %v244 = vand.u32 %v243, 4294901760
    %245 = vmatpush.msra.mxu0 %v244
    %v246 = vand.u32 %v146, 4294901760
    %247 = vmatmul.f32.gmra.mxu0 %v246
    %v248 = vpop.f32.mrf.mxu0
    %v249 = vadd.f32 %v184, %v248
    %v250 = vand.u32 %v149, 4294901760
    %251 = vmatmul.f32.gmra.mxu0 %v250
    %v252 = vpop.f32.mrf.mxu0
    %v253 = vadd.f32 %v192, %v252
    %v254 = vand.u32 %v152, 4294901760
    %255 = vmatmul.f32.gmra.mxu0 %v254
    %v256 = vpop.f32.mrf.mxu0
    %v257 = vadd.f32 %v200, %v256
    %v258 = vand.u32 %v155, 4294901760
    %259 = vmatmul.f32.gmra.mxu0 %v258
    %v260 = vpop.f32.mrf.mxu0
    %v261 = vadd.f32 %v208, %v260
    %262 = vdwg.mxu0
    %263 = vmatpush.msra.mxu0 0.0
    %264 = vmatpush.msra.mxu0 0.0
    %265 = vmatpush.msra.mxu0 0.0
    %266 = vmatpush.msra.mxu0 0.0
    %267 = vmatpush.msra.mxu0 0.0
    %268 = vmatpush.msra.mxu0 0.0
    %269 = vmatpush.msra.mxu0 0.0
    %270 = vmatpush.msra.mxu0 0.0
    %271 = vmatpush.msra.mxu0 0.0
    %272 = vmatpush.msra.mxu0 0.0
    %273 = vmatpush.msra.mxu0 0.0
    %274 = vmatpush.msra.mxu0 0.0
    %v275 = vand.u32 %v115, 4294901760
    %v276 = vsub.f32 %v115, %v275
    %277 = vmatpush.msra.mxu0 %v276
    %v278 = vand.u32 %v114, 4294901760
    %v279 = vsub.f32 %v114, %v278
    %280 = vmatpush.msra.mxu0 %v279
    %v281 = vand.u32 %v113, 4294901760
    %v282 = vsub.f32 %v113, %v281
    %283 = vmatpush.msra.mxu0 %v282
    %v284 = vand.u32 %v112, 4294901760
    %v285 = vsub.f32 %v112, %v284
    %286 = vmatpush.msra.mxu0 %v285
    %v287 = vand.u32 %v146, 4294901760
    %v288 = vsub.f32 %v146, %v287
    %289 = vmatmul.f32.gmra.mxu0 %v288
    %v290 = vpop.f32.mrf.mxu0
    %v291 = vadd.f32 %v249, %v290
    %v292 = vand.u32 %v149, 4294901760
    %v293 = vsub.f32 %v149, %v292
    %294 = vmatmul.f32.gmra.mxu0 %v293
    %v295 = vpop.f32.mrf.mxu0
    %v296 = vadd.f32 %v253, %v295
    %v297 = vand.u32 %v152, 4294901760
    %v298 = vsub.f32 %v152, %v297
    %299 = vmatmul.f32.gmra.mxu0 %v298
    %v300 = vpop.f32.mrf.mxu0
    %v301 = vadd.f32 %v257, %v300
    %v302 = vand.u32 %v155, 4294901760
    %v303 = vsub.f32 %v155, %v302
    %304 = vmatmul.f32.gmra.mxu0 %v303
    %v305 = vpop.f32.mrf.mxu0
    %v306 = vadd.f32 %v261, %v305
    %307 = vdwg.mxu0
    %308 = vmatpush.msra.mxu0 0.0
    %309 = vmatpush.msra.mxu0 0.0
    %310 = vmatpush.msra.mxu0 0.0
    %311 = vmatpush.msra.mxu0 0.0
    %312 = vmatpush.msra.mxu0 0.0
    %313 = vmatpush.msra.mxu0 0.0
    %314 = vmatpush.msra.mxu0 0.0
    %315 = vmatpush.msra.mxu0 0.0
    %316 = vmatpush.msra.mxu0 0.0
    %317 = vmatpush.msra.mxu0 0.0
    %318 = vmatpush.msra.mxu0 0.0
    %319 = vmatpush.msra.mxu0 0.0
    %v320 = vand.u32 %v115, 4294901760
    %321 = vmatpush.msra.mxu0 %v320
    %v322 = vand.u32 %v114, 4294901760
    %323 = vmatpush.msra.mxu0 %v322
    %v324 = vand.u32 %v113, 4294901760
    %325 = vmatpush.msra.mxu0 %v324
    %v326 = vand.u32 %v112, 4294901760
    %327 = vmatpush.msra.mxu0 %v326
    %v328 = vand.u32 %v146, 4294901760
    %v329 = vsub.f32 %v146, %v328
    %v330 = vand.u32 %v329, 4294901760
    %331 = vmatmul.f32.gmra.mxu0 %v330
    %v332 = vpop.f32.mrf.mxu0
    %v333 = vadd.f32 %v291, %v332
    %v334 = vand.u32 %v149, 4294901760
    %v335 = vsub.f32 %v149, %v334
    %v336 = vand.u32 %v335, 4294901760
    %337 = vmatmul.f32.gmra.mxu0 %v336
    %v338 = vpop.f32.mrf.mxu0
    %v339 = vadd.f32 %v296, %v338
    %v340 = vand.u32 %v152, 4294901760
    %v341 = vsub.f32 %v152, %v340
    %v342 = vand.u32 %v341, 4294901760
    %343 = vmatmul.f32.gmra.mxu0 %v342
    %v344 = vpop.f32.mrf.mxu0
    %v345 = vadd.f32 %v301, %v344
    %v346 = vand.u32 %v155, 4294901760
    %v347 = vsub.f32 %v155, %v346
    %v348 = vand.u32 %v347, 4294901760
    %349 = vmatmul.f32.gmra.mxu0 %v348
    %v350 = vpop.f32.mrf.mxu0
    %v351 = vadd.f32 %v306, %v350
    %352 = vdwg.mxu0
    %353 = vmatpush.msra.mxu0 0.0
    %354 = vmatpush.msra.mxu0 0.0
    %355 = vmatpush.msra.mxu0 0.0
    %356 = vmatpush.msra.mxu0 0.0
    %357 = vmatpush.msra.mxu0 0.0
    %358 = vmatpush.msra.mxu0 0.0
    %359 = vmatpush.msra.mxu0 0.0
    %360 = vmatpush.msra.mxu0 0.0
    %361 = vmatpush.msra.mxu0 0.0
    %362 = vmatpush.msra.mxu0 0.0
    %363 = vmatpush.msra.mxu0 0.0
    %364 = vmatpush.msra.mxu0 0.0
    %v365 = vand.u32 %v115, 4294901760
    %v366 = vsub.f32 %v115, %v365
    %v367 = vand.u32 %v366, 4294901760
    %368 = vmatpush.msra.mxu0 %v367
    %v369 = vand.u32 %v114, 4294901760
    %v370 = vsub.f32 %v114, %v369
    %v371 = vand.u32 %v370, 4294901760
    %372 = vmatpush.msra.mxu0 %v371
    %v373 = vand.u32 %v113, 4294901760
    %v374 = vsub.f32 %v113, %v373
    %v375 = vand.u32 %v374, 4294901760
    %376 = vmatpush.msra.mxu0 %v375
    %v377 = vand.u32 %v112, 4294901760
    %v378 = vsub.f32 %v112, %v377
    %v379 = vand.u32 %v378, 4294901760
    %380 = vmatpush.msra.mxu0 %v379
    %v381 = vand.u32 %v146, 4294901760
    %382 = vmatmul.f32.gmra.mxu0 %v381
    %v383 = vpop.f32.mrf.mxu0
    %v384 = vadd.f32 %v333, %v383
    %v385 = vand.u32 %v149, 4294901760
    %386 = vmatmul.f32.gmra.mxu0 %v385
    %v387 = vpop.f32.mrf.mxu0
    %v388 = vadd.f32 %v339, %v387
    %v389 = vand.u32 %v152, 4294901760
    %390 = vmatmul.f32.gmra.mxu0 %v389
    %v391 = vpop.f32.mrf.mxu0
    %v392 = vadd.f32 %v345, %v391
    %v393 = vand.u32 %v155, 4294901760
    %394 = vmatmul.f32.gmra.mxu0 %v393
    %v395 = vpop.f32.mrf.mxu0
    %v396 = vadd.f32 %v351, %v395
    %397 = vdwg.mxu0
    %398 = vmatpush.msra.mxu0 0.0
    %399 = vmatpush.msra.mxu0 0.0
    %400 = vmatpush.msra.mxu0 0.0
    %401 = vmatpush.msra.mxu0 0.0
    %402 = vmatpush.msra.mxu0 0.0
    %403 = vmatpush.msra.mxu0 0.0
    %404 = vmatpush.msra.mxu0 0.0
    %405 = vmatpush.msra.mxu0 0.0
    %406 = vmatpush.msra.mxu0 0.0
    %407 = vmatpush.msra.mxu0 0.0
    %408 = vmatpush.msra.mxu0 0.0
    %409 = vmatpush.msra.mxu0 0.0
    %v410 = vand.u32 %v115, 4294901760
    %411 = vmatpush.msra.mxu0 %v410
    %v412 = vand.u32 %v114, 4294901760
    %413 = vmatpush.msra.mxu0 %v412
    %v414 = vand.u32 %v113, 4294901760
    %415 = vmatpush.msra.mxu0 %v414
    %v416 = vand.u32 %v112, 4294901760
    %417 = vmatpush.msra.mxu0 %v416
    %v418 = vand.u32 %v146, 4294901760
    %419 = vmatmul.f32.gmra.mxu0 %v418
    %v420 = vpop.f32.mrf.mxu0
    %v421 = vadd.f32 %v384, %v420
    %v422 = vand.u32 %v149, 4294901760
    %423 = vmatmul.f32.gmra.mxu0 %v422
    %v424 = vpop.f32.mrf.mxu0
    %v425 = vadd.f32 %v388, %v424
    %v426 = vand.u32 %v152, 4294901760
    %427 = vmatmul.f32.gmra.mxu0 %v426
    %v428 = vpop.f32.mrf.mxu0
    %v429 = vadd.f32 %v392, %v428
    %v430 = vand.u32 %v155, 4294901760
    %431 = vmatmul.f32.gmra.mxu0 %v430
    %v432 = vpop.f32.mrf.mxu0
    %v433 = vadd.f32 %v396, %v432
    %434 = vdwg.mxu0
    %v435 = vtanh.pop %v421
    %v436 = vtanh.pop %v425
    %v437 = vtanh.pop %v429
    %v438 = vtanh.pop %v433
    %v439 = vld [vmem:[%s5] sm:$0xff]
    %v440 = vld [vmem:[%s5 + $0x8] sm:$0xff]
    %v441 = vld [vmem:[%s5 + $0x10] sm:$0xff]
    %v442 = vld [vmem:[%s5 + $0x18] sm:$0xff]
    %444 = vset.pattern.permute.xlu0 0
    %445 = vperm.xlu0 %444, %v439
    %v446 = vpop.permute.xlu0 %445
    %449 = vset.pattern.permute.xlu0 0
    %450 = vperm.xlu0 %449, %v440
    %v451 = vpop.permute.xlu0 %450
    %454 = vset.pattern.permute.xlu0 0
    %455 = vperm.xlu0 %454, %v441
    %v456 = vpop.permute.xlu0 %455
    %459 = vset.pattern.permute.xlu0 0
    %460 = vperm.xlu0 %459, %v442
    %v461 = vpop.permute.xlu0 %460
    %v463 = vmul.f32 %v446, %v435
    %v464 = vmul.f32 %v451, %v436
    %v465 = vmul.f32 %v456, %v437
    %v466 = vmul.f32 %v461, %v438
    %v467 = vadd.f32 %v463, %v464
    %v468 = vadd.f32 %v467, %v465
    %v469 = vadd.f32 %v468, %v466
    %v470 = vrot.slane %v469, 4
    %v471 = vadd.f32 %v469, %v470
    %v472 = vrot.slane %v471, 2
    %v473 = vadd.f32 %v471, %v472
    %v474 = vrot.slane %v473, 1
    %v475 = vadd.f32 %v473, %v474
    %v476 = vld [vmem:[#allocation2] sm:$0x1]
    %478 = vset.pattern.permute.xlu0 0
    %479 = vperm.xlu0 %478, %v476
    %v480 = vpop.permute.xlu0 %479
    %v482 = vperm.slane %v480, 0
    %v483 = vadd.f32 %v475, %v482
    %484 = vst [vmem:[#allocation3] sm:$0x1] %v483
    // Predicated region
    $region30: #{tpu_custom_call.1} parent=1 // pred_check
      _
    $region31: #{tpu_custom_call.1} parent=1 // pred_check_branch
      %486 = sbr.rel (0) target = $region33
    $region32: #{tpu_custom_call.1} parent=1 // pred_region
      %488 = vsyncadd [#allocation4], 0
      %s490 = sshll.u32 [#allocation3], 4
      %s491 = int_to_ptr.vmem [resolvable:$true] %s490
      %s492 = sshll.u32 %s7, 4
      %s493 = int_to_ptr.hbm [resolvable:$true] %s492
      %495 = dma.vmem_to_hbm [thread:$0]  %s491, 16, %s493, [#allocation4]
    $region33: #{tpu_custom_call.1} parent=1 // pred_fallthru
      _
    // Predicated region
    $region34: #{tpu_custom_call.1} parent=1 // pred_check
      _
    $region35: #{tpu_custom_call.1} parent=1 // pred_check_branch
      %497 = sbr.rel (0) target = $region37
    $region36: #{tpu_custom_call.1} parent=1 // pred_region
      %499 = dma.done [#allocation4], 16
    $region37: #{tpu_custom_call.1} parent=1 // pred_fallthru
      _
    %500 = vsyncpa [#allocation4], 1

</llo_original>
